<compile_context>
chip_gen: v7x
topology: tpu7x:2x2x1
jax: 0.10.0
libtpu: 0.0.40
codegen_flags: <defaults>
</compile_context>

<pallas_src>
import functools

import jax
import jax.numpy as jnp
from jax import lax
from jax.experimental import pallas as pl
from jax.experimental.pallas import tpu as pltpu


def _round_up(x, m):
    return ((x + m - 1) // m) * m


def _pick_tile(dim, cap):
    """Full-dim block when it fits under the cap (always layout-legal),
    otherwise the cap itself (caps are kept 8/128-aligned by the caller)."""
    return dim if dim <= cap else cap


def _linear_tanh_single_k_kernel(x_ref, w_ref, o_ref, *, compute_dtype):
    """One (TM, TN) output tile; the whole K dimension is resident in VMEM.

    x_ref: (TM, K)   activations
    w_ref: (TN, K)   weight in native torch.nn.Linear (out, in) layout
    o_ref: (TM, TN)  output tile
    """
    x = x_ref[...].astype(compute_dtype)
    w = w_ref[...].astype(compute_dtype)
    acc = lax.dot_general(
        x, w,
        dimension_numbers=(((1,), (1,)), ((), ())),   # contract K with K: x @ w.T
        preferred_element_type=jnp.float32,
    )
    o_ref[...] = jnp.tanh(acc).astype(o_ref.dtype)


def _linear_tanh_ktiled_kernel(x_ref, w_ref, o_ref, acc_ref, *, compute_dtype):
    """K-tiled fallback (large in_features): f32 VMEM accumulator across the
    innermost (reduction) grid axis, tanh + store on the last K step."""
    k = pl.program_id(2)

    @pl.when(k == 0)
    def _():
        acc_ref[...] = jnp.zeros_like(acc_ref)

    x = x_ref[...].astype(compute_dtype)
    w = w_ref[...].astype(compute_dtype)
    acc_ref[...] += lax.dot_general(
        x, w,
        dimension_numbers=(((1,), (1,)), ((), ())),
        preferred_element_type=jnp.float32,
    )

    @pl.when(k == pl.num_programs(2) - 1)
    def _():
        o_ref[...] = jnp.tanh(acc_ref[...]).astype(o_ref.dtype)


@functools.partial(
    jax.jit,
    static_argnames=("use_bf16", "tm_cap", "tn_cap", "tk_cap", "k_single_cap"),
)
def linear_block_forward(x, weight, *, use_bf16=True,
                         tm_cap=256, tn_cap=512, tk_cap=2048,
                         k_single_cap=2048):
    """Pallas implementation of LinearBlock.forward (default config).

    Args:
      x:      (batch, in_features) float32
      weight: (out_features, in_features) float32 -- torch.nn.Linear layout
      use_bf16: cast MXU operands to bf16 (f32 accumulate).  Set False for a
                strict-f32 reference path.
    Returns:
      (batch, out_features), x.dtype == tanh(x @ weight.T)
    """
    assert x.ndim == 2 and weight.ndim == 2
    batch, in_f = x.shape
    out_f, in_f_w = weight.shape
    assert in_f == in_f_w
    assert tm_cap % 8 == 0 and tn_cap % 128 == 0 and tk_cap % 128 == 0

    compute_dtype = jnp.bfloat16 if use_bf16 else x.dtype

    # ----- M / N tile selection (full-dim or aligned cap; no padding) -----
    tm = _pick_tile(batch, tm_cap)
    tn = _pick_tile(out_f, tn_cap)
    grid_m = pl.cdiv(batch, tm)
    grid_n = pl.cdiv(out_f, tn)

    # v7x has 2 TensorCores sharded over "parallel" axes: guarantee >= 2
    # M x N blocks when an alignment-preserving split exists.
    if grid_m * grid_n < 2:
        if tn % 256 == 0:
            tn //= 2
        elif tm % 16 == 0:
            tm //= 2
        grid_m = pl.cdiv(batch, tm)
        grid_n = pl.cdiv(out_f, tn)

    cost = pl.CostEstimate(
        flops=2 * batch * out_f * in_f,
        transcendentals=batch * out_f,
        bytes_accessed=4 * (batch * in_f + out_f * in_f + batch * out_f),
    )
    cparams_common = dict(vmem_limit_bytes=32 * 1024 * 1024)

    # ----- Fast path: whole K fits one VMEM tile (typical LinearBlock) -----
    if in_f <= k_single_cap:
        kernel = functools.partial(_linear_tanh_single_k_kernel,
                                   compute_dtype=compute_dtype)
        return pl.pallas_call(
            kernel,
            out_shape=jax.ShapeDtypeStruct((batch, out_f), x.dtype),
            grid=(grid_m, grid_n),
            in_specs=[
                pl.BlockSpec((tm, in_f), lambda i, j: (i, 0)),
                pl.BlockSpec((tn, in_f), lambda i, j: (j, 0)),
            ],
            out_specs=pl.BlockSpec((tm, tn), lambda i, j: (i, j)),
            compiler_params=pltpu.CompilerParams(
                dimension_semantics=("parallel", "parallel"),
                **cparams_common,
            ),
            cost_estimate=cost,
        )(x, weight)

    # ----- Fallback: K-tiled reduction with an f32 accumulator -------------
    tk = min(tk_cap, _round_up(in_f, 128))
    k_pad = _round_up(in_f, tk)
    grid_k = k_pad // tk

    # Zero-pad K only (required for reduction correctness); M/N edges are
    # handled by masked partial blocks.
    xp = x if k_pad == in_f else jnp.pad(x, ((0, 0), (0, k_pad - in_f)))
    wp = weight if k_pad == in_f else jnp.pad(weight, ((0, 0), (0, k_pad - in_f)))

    kernel = functools.partial(_linear_tanh_ktiled_kernel,
                               compute_dtype=compute_dtype)
    return pl.pallas_call(
        kernel,
        out_shape=jax.ShapeDtypeStruct((batch, out_f), x.dtype),
        grid=(grid_m, grid_n, grid_k),
        in_specs=[
            pl.BlockSpec((tm, tk), lambda i, j, k: (i, k)),
            pl.BlockSpec((tn, tk), lambda i, j, k: (j, k)),
        ],
        out_specs=pl.BlockSpec((tm, tn), lambda i, j, k: (i, j)),
        scratch_shapes=[pltpu.VMEM((tm, tn), jnp.float32)],
        compiler_params=pltpu.CompilerParams(
            dimension_semantics=("parallel", "parallel", "arbitrary"),
            **cparams_common,
        ),
        cost_estimate=cost,
    )(xp, wp)


def reference_forward(x, weight):
    return jnp.tanh(x @ weight.T)


if __name__ == "__main__":
    key = jax.random.PRNGKey(0)
    k_x, k_w, k_x2, k_w2, k_x3, k_w3 = jax.random.split(key, 6)

    # --- Small shape matching a typical LinearBlock -------------------------
    batch, in_channels, out_channels = 16, 32, 64
    bound = 1.0 / (in_channels ** 0.5)   # mimic torch.nn.Linear init range
    weight = jax.random.uniform(
        k_w, (out_channels, in_channels), jnp.float32, -bound, bound)
    x = jax.random.normal(k_x, (batch, in_channels), jnp.float32)
    y_ref = reference_forward(x, weight)

    # Strict f32 path.
    y_f32 = jax.block_until_ready(linear_block_forward(x, weight, use_bf16=False))
    assert y_f32.shape == (batch, out_channels), y_f32.shape
    assert jnp.allclose(y_f32, y_ref, atol=1e-5, rtol=1e-5), "f32 path mismatch"

    # Default bf16-operand / f32-accumulate fast path.
    y_bf16 = jax.block_until_ready(linear_block_forward(x, weight))
    assert jnp.allclose(y_bf16, y_ref, atol=2e-2, rtol=2e-2), "bf16 path mismatch"

    # --- Misaligned multi-tile shapes: partial M/N edge blocks, full-K path --
    b2, i2, o2 = 300, 200, 600
    w2 = jax.random.uniform(k_w2, (o2, i2), jnp.float32, -0.07, 0.07)
    x2 = jax.random.normal(k_x2, (b2, i2), jnp.float32)
    y2 = jax.block_until_ready(linear_block_forward(x2, w2))
    assert jnp.allclose(y2, reference_forward(x2, w2), atol=2e-2, rtol=2e-2), \
        "edge-block path mismatch"

    # --- Force the K-tiled accumulator path (with K zero-padding) -----------
    b3, i3, o3 = 64, 200, 256
    w3 = jax.random.uniform(k_w3, (o3, i3), jnp.float32, -0.07, 0.07)
    x3 = jax.random.normal(k_x3, (b3, i3), jnp.float32)
    y3 = jax.block_until_ready(
        linear_block_forward(x3, w3, k_single_cap=128, tk_cap=128))
    assert jnp.allclose(y3, reference_forward(x3, w3), atol=2e-2, rtol=2e-2), \
        "K-tiled bf16 path mismatch"
    y3f = jax.block_until_ready(
        linear_block_forward(x3, w3, use_bf16=False, k_single_cap=128, tk_cap=128))
    assert jnp.allclose(y3f, reference_forward(x3, w3), atol=1e-4, rtol=1e-4), \
        "K-tiled f32 path mismatch"

    print("KERNEL_OK")
</pallas_src>

<mosaic_0001>
module attributes {stable_mosaic.version = 11 : i64} {
  func.func @_linear_tanh_single_k_kernel(%arg0: i32, %arg1: i32, %arg2: memref<8x32xf32, #tpu.memory_space<vmem>>, %arg3: memref<64x32xf32, #tpu.memory_space<vmem>>, %arg4: memref<8x64xf32, #tpu.memory_space<vmem>>) attributes {dimension_semantics = [#tpu.dimension_semantics<parallel>, #tpu.dimension_semantics<parallel>], iteration_bounds = array<i64: 2, 1>, scalar_prefetch = 0 : i64, scratch_operands = 0 : i64, tpu.core_type = #tpu.core_type<tc>, window_params = [{transform_indices = @transform_0, window_bounds = array<i64: 8, 32>}, {transform_indices = @transform_1, window_bounds = array<i64: 64, 32>}, {transform_indices = @transform_2, window_bounds = array<i64: 8, 64>}]} {
    %c0 = arith.constant 0 : index
    %c0_0 = arith.constant 0 : index
    %0 = vector.load %arg2[%c0, %c0_0] : memref<8x32xf32, #tpu.memory_space<vmem>>, vector<8x32xf32>
    %c0_1 = arith.constant 0 : index
    %c0_2 = arith.constant 0 : index
    %1 = vector.load %arg3[%c0_1, %c0_2] : memref<64x32xf32, #tpu.memory_space<vmem>>, vector<64x32xf32>
    %cst = arith.constant dense<0.000000e+00> : vector<8x64xf32>
    %2 = tpu.matmul %0, %1, %cst {dimension_numbers = #tpu.dot_dimension_numbers<[1], [1], [0], [0], [0, 0, 1, 0], [], []>} : vector<8x32xf32>, vector<64x32xf32>, vector<8x64xf32> -> vector<8x64xf32>
    %3 = math.tanh %2 : vector<8x64xf32>
    %c0_3 = arith.constant 0 : index
    %c0_4 = arith.constant 0 : index
    %4 = vector.load %arg4[%c0_3, %c0_4] : memref<8x64xf32, #tpu.memory_space<vmem>>, vector<8x64xf32>
    tpu.vector_store %arg4[%c0_3, %c0_4], %3 {strides = array<i32>} : memref<8x64xf32, #tpu.memory_space<vmem>>, vector<8x64xf32>,
    return
  }
  func.func @transform_0(%arg0: i32, %arg1: i32) -> (i32, i32) {
    %c0_i32 = arith.constant 0 : i32
    %c0_i32_0 = arith.constant 0 : i32
    return %arg0, %c0_i32 : i32, i32
  }
  func.func @transform_1(%arg0: i32, %arg1: i32) -> (i32, i32) {
    %c0_i32 = arith.constant 0 : i32
    %c0_i32_0 = arith.constant 0 : i32
    return %arg1, %c0_i32 : i32, i32
  }
  func.func @transform_2(%arg0: i32, %arg1: i32) -> (i32, i32) {
    %c0_i32 = arith.constant 0 : i32
    return %arg0, %arg1 : i32, i32
  }
}

</mosaic_0001>

<llo_original>
// kernel: linear_block_forward.1
$region0: #{linear_block_forward.1}
  #allocation0 [shape = 'u32[]', space=smem, size = 0x4, offset = 0x4, fixed_abs, tag = 'smem constant byte address 0x4 - core index']
  #allocation1 [shape = 'u32[144,128]{1,0:T(1,128)}', space=vmem, size = 0x12000, scoped, tag = 'internal scratch']
  %s0 = inlined_call_operand.vmem [shape: f32[16,32], index: 0, kind: input, shape index: {}]
  %s1 = inlined_call_operand.vmem [shape: f32[64,32], index: 1, kind: input, shape index: {}]
  %s2 = inlined_call_operand.hbm [shape: f32[16,64], index: 2, kind: output, shape index: {}]
  %s3 = sld [smem:[#allocation0]]
  $region41: #{linear_block_forward.1} parent=0
    _
  %s5 = ssub.s32 1, %s3
  %s6 = scalar_select 0, %s5, %s3
  $region1: #{linear_block_forward.1} parent=0
    #allocation2 [shape = 'u8[8192]{0}', space=vmem, size = 0x2000, scoped, tag = 'output window, operand 0']
    #allocation3 [shape = 's32[2]{0}', space=sflag, size = 0x8, scoped, tag = 'scoped memory for linear_block_forward.1']
    %7 = vsyncpa [#allocation3], 0
    %s8 = scalar_lea.sflag [#allocation3], 1
    %9 = vsyncpa %s8, 0
    loop: start=0, step=1, limit=4
    $region2: #{linear_block_forward.1} parent=1 // loop_pre_header
      _
    $region3: #{linear_block_forward.1} parent=1 // loop_header
      %s11 = sphi 0, %s15
      %p12 = scmp.ge.s32.totalorder %s11, 4
      %s18 = sphi 0, %s30
      %s19 = sphi 0, %s26
      %s20 = sphi 0, %s18
      %s21 = sphi 0, %s19
      %s22 = sphi 0, %s20
      %s23 = sphi 0, %s21
      %s33 = sphi 0, %s35
      %s36 = sphi 0, %s33
      %s37 = sphi 0, %s36
      %s53 = sphi 0, %s37
      %s59 = sphi 0, %s61
      %s62 = sphi 0, %s59
      %s63 = sphi 0, %s62
      %s79 = sphi 0, %s63
      %s87 = sphi 0, %s89
      %s90 = sphi 0, %s87
      %s91 = sphi 0, %s90
      %s107 = sphi 0, %s91
    $region4: #{linear_block_forward.1} parent=1 // loop_header_branch
      %14 = sbr.rel (%p12) target = $region8
    $region5: #{linear_block_forward.1} parent=1 // loop_body
      %s16 = ssub.s32 %s11, 1
      %s17 = ssub.s32 %s11, 2
      %s24 = sadd.s32 1, %s19
      %p25 = scmp.ge.s32.totalorder %s24, 1
      %s26 = scalar_select %p25, 0, %s24
      %s27 = sadd.s32 1, %s18
      %s28 = scalar_select %p25, %s27, %s18
      %p29 = scmp.ge.s32.totalorder %s28, 2
      %s30 = scalar_select %p29, 0, %s28
      %s31 = ssub.s32 %s18, %s30
      %p32 = scmp.eq.s32.totalorder %s31, 0
      %s34 = sadd.s32 %s33, 1
      %s35 = scalar_select %p32, %s33, %s34
      %p38 = pneg %p32
      %p39 = scmp.eq.s32.totalorder %s11, 1
      %p40 = por %p38, %p39
      %p41 = scmp.ne.s32.totalorder %s33, %s36
      %p42 = scmp.eq.s32.totalorder %s11, 0
      %p43 = por %p41, %p42
      %p44 = scmp.ne.s32.totalorder %s33, %s36
      %p45 = scmp.eq.s32.totalorder %s16, 1
      %p46 = por %p44, %p45
      %p47 = scmp.ne.s32.totalorder %s36, %s37
      %p48 = scmp.eq.s32.totalorder %s16, 0
      %p49 = por %p47, %p48
      %p50 = scmp.ne.s32.totalorder %s36, %s37
      %p51 = scmp.eq.s32.totalorder %s17, 1
      %p52 = por %p50, %p51
      %p54 = scmp.ne.s32.totalorder %s37, %s53
      %p55 = scmp.eq.s32.totalorder %s17, 0
      %p56 = por %p54, %p55
      %s57 = ssub.s32 %s19, %s26
      %p58 = scmp.eq.s32.totalorder %s57, 0
      %s60 = sadd.s32 %s59, 1
      %s61 = scalar_select %p58, %s59, %s60
      %p64 = pneg %p58
      %p65 = scmp.eq.s32.totalorder %s11, 1
      %p66 = por %p64, %p65
      %p67 = scmp.ne.s32.totalorder %s59, %s62
      %p68 = scmp.eq.s32.totalorder %s11, 0
      %p69 = por %p67, %p68
      %p70 = scmp.ne.s32.totalorder %s59, %s62
      %p71 = scmp.eq.s32.totalorder %s16, 1
      %p72 = por %p70, %p71
      %p73 = scmp.ne.s32.totalorder %s62, %s63
      %p74 = scmp.eq.s32.totalorder %s16, 0
      %p75 = por %p73, %p74
      %p76 = scmp.ne.s32.totalorder %s62, %s63
      %p77 = scmp.eq.s32.totalorder %s17, 1
      %p78 = por %p76, %p77
      %p80 = scmp.ne.s32.totalorder %s63, %s79
      %p81 = scmp.eq.s32.totalorder %s17, 0
      %p82 = por %p80, %p81
      %s83 = ssub.s32 %s18, %s30
      %s84 = ssub.s32 %s19, %s26
      %s85 = sor.u32 %s83, %s84
      %p86 = scmp.eq.s32.totalorder %s85, 0
      %s88 = sadd.s32 %s87, 1
      %s89 = scalar_select %p86, %s87, %s88
      %p92 = pneg %p86
      %p93 = scmp.eq.s32.totalorder %s11, 1
      %p94 = por %p92, %p93
      %p95 = scmp.ne.s32.totalorder %s87, %s90
      %p96 = scmp.eq.s32.totalorder %s11, 0
      %p97 = por %p95, %p96
      %p98 = scmp.ne.s32.totalorder %s87, %s90
      %p99 = scmp.eq.s32.totalorder %s16, 1
      %p100 = por %p98, %p99
      %p101 = scmp.ne.s32.totalorder %s90, %s91
      %p102 = scmp.eq.s32.totalorder %s16, 0
      %p103 = por %p101, %p102
      %p104 = scmp.ne.s32.totalorder %s90, %s91
      %p105 = scmp.eq.s32.totalorder %s17, 1
      %p106 = por %p104, %p105
      %p108 = scmp.ne.s32.totalorder %s91, %s107
      %p109 = scmp.eq.s32.totalorder %s17, 0
      %p110 = por %p108, %p109
      %p111 = scmp.le.s32.totalorder 1, %s11
      %p112 = scmp.lt.s32.totalorder %s11, 3
      %p113 = pnand %p111, %p112
      %p114 = pneg %p113
      // Predicated region
      $region9: #{linear_block_forward.1} parent=5 // pred_check
        _
      $region10: #{linear_block_forward.1} parent=5 // pred_check_branch
        %116 = sbr.rel (%p113) target = $region12
      $region11: #{linear_block_forward.1} parent=5 // pred_region
        %s117 = ssub.s32 %s11, 1
        // Predicated region
        $region13: #{linear_block_forward.1} parent=11 // pred_check
          %p118 = pneg %p75
        $region14: #{linear_block_forward.1} parent=11 // pred_check_branch
          %120 = sbr.rel (%p118) target = $region16
        $region15: #{linear_block_forward.1} parent=11 // pred_region
          %s121 = smul.u32 8, %s21
          %p122 = scmp.lt.s32.totalorder %s121, 7
          %s123 = scalar_select %p122, %s121, 7
          %s124 = smul.addr %s123, 8
          %s125 = scalar_lea.vmem %s1, %s124
          %s126 = smul.u32 8, %s21
        $region16: #{linear_block_forward.1} parent=11 // pred_fallthru
          _
      $region12: #{linear_block_forward.1} parent=5 // pred_fallthru
        _
      %p127 = scmp.lt.s32.totalorder %s11, 2
      // Predicated region
      $region17: #{linear_block_forward.1} parent=5 // pred_check
        %p128 = pneg %p127
      $region18: #{linear_block_forward.1} parent=5 // pred_check_branch
        %130 = sbr.rel (%p128) target = $region20
      $region19: #{linear_block_forward.1} parent=5 // pred_region
        // Predicated region
        $region21: #{linear_block_forward.1} parent=19 // pred_check
          %p131 = pneg %p43
        $region22: #{linear_block_forward.1} parent=19 // pred_check_branch
          %133 = sbr.rel (%p131) target = $region24
        $region23: #{linear_block_forward.1} parent=19 // pred_region
          %p134 = scmp.lt.s32.totalorder %s18, 1
          %s135 = scalar_select %p134, %s18, 1
          %s136 = smul.addr %s135, 8
          %s137 = scalar_lea.vmem %s0, %s136
        $region24: #{linear_block_forward.1} parent=19 // pred_fallthru
          _
      $region20: #{linear_block_forward.1} parent=5 // pred_fallthru
        _
      %p138 = scmp.le.s32.totalorder 1, %s11
      %p139 = scmp.lt.s32.totalorder %s11, 3
      %p140 = pnand %p138, %p139
      %p141 = pneg %p140
      // Predicated region
      $region25: #{linear_block_forward.1} parent=5 // pred_check
        _
      $region26: #{linear_block_forward.1} parent=5 // pred_check_branch
        %143 = sbr.rel (%p140) target = $region28
      $region27: #{linear_block_forward.1} parent=5 // pred_region
        %s144 = ssub.s32 %s11, 1
        %p145 = scmp.lt.s32.totalorder %s20, 1
        %s146 = scalar_select %p145, %s20, 1
        %s147 = smul.addr %s146, 8
        %s148 = scalar_lea.vmem %s0, %s147
        %p149 = pneg %p49
        %p150 = pneg %p46
        %s151 = smul.u32 8, %s21
        %p152 = scmp.lt.s32.totalorder %s151, 7
        %s153 = scalar_select %p152, %s151, 7
        %s154 = smul.addr %s153, 8
        %s155 = scalar_lea.vmem %s1, %s154
        %p156 = pneg %p75
        %p157 = pneg %p72
        %p158 = pneg %p103
        %p159 = pneg %p100
        %s160 = sand.u32 %s90, 1
        %s161 = scalar_lea.sflag [#allocation3], %s160
        %s162 = sand.u32 %s90, 1
        %s163 = smul.addr %s162, 8
        %s164 = scalar_lea.vmem [#allocation2], %s163
        %p165 = scmp.lt.s32.totalorder %s20, 1
        %s166 = scalar_select %p165, %s20, 1
        %s167 = smul.addr %s166, 8
        %s168 = scalar_lea.vmem %s0, %s167
        %s169 = smul.u32 8, %s21
        %p170 = scmp.lt.s32.totalorder %s169, 7
        %s171 = scalar_select %p170, %s169, 7
        %s172 = smul.addr %s171, 8
        %s173 = scalar_lea.vmem %s1, %s172
        %s174 = smul.u32 8, %s21
        %v175 = vld [vmem:[%s168] sm:$0xff]
        %v176 = vld [vmem:[%s173] sm:$0xff]
        %v177 = vld [vmem:[%s173 + $0x8] sm:$0xff]
        %v178 = vld [vmem:[%s173 + $0x10] sm:$0xff]
        %v179 = vld [vmem:[%s173 + $0x18] sm:$0xff]
        %v180 = vld [vmem:[%s173 + $0x20] sm:$0xff]
        %v181 = vld [vmem:[%s173 + $0x28] sm:$0xff]
        %v182 = vld [vmem:[%s173 + $0x30] sm:$0xff]
        %v183 = vld [vmem:[%s173 + $0x38] sm:$0xff]
        %vm184 = vcmask 261120
        %v186 = vsel %vm184, %v175, 0
        %v189 = vsel %vm184, %v176, 0
        %v192 = vsel %vm184, %v177, 0
        %v195 = vsel %vm184, %v178, 0
        %v198 = vsel %vm184, %v179, 0
        %v201 = vsel %vm184, %v180, 0
        %v204 = vsel %vm184, %v181, 0
        %v207 = vsel %vm184, %v182, 0
        %v210 = vsel %vm184, %v183, 0
        %212 = vmatprep.subr.mxu0 0.0
        %213 = vmatpush1.xpose.msra.mxu0 %v189
        %214 = vmatprep.subr.mxu0 0.0
        %215 = vmatpush1.xpose.msra.mxu0 %v192
        %216 = vmatprep.subr.mxu0 0.0
        %217 = vmatpush1.xpose.msra.mxu0 %v195
        %218 = vmatprep.subr.mxu0 0.0
        %219 = vmatpush1.xpose.msra.mxu0 %v198
        %220 = vmatprep.subr.mxu0 0.0
        %221 = vmatpush1.xpose.msra.mxu0 %v201
        %222 = vmatprep.subr.mxu0 0.0
        %223 = vmatpush1.xpose.msra.mxu0 %v204
        %224 = vmatprep.subr.mxu0 0.0
        %225 = vmatpush1.xpose.msra.mxu0 %v207
        %226 = vmatprep.subr.mxu0 0.0
        %227 = vmatpush1.xpose.msra.mxu0 %v210
        %228 = vmatprep.subr.mxu0 0.0
        %229 = vmatpush1.xpose.msra.mxu0 0.0
        %230 = vmatprep.subr.mxu0 0.0
        %231 = vmatpush1.xpose.msra.mxu0 0.0
        %232 = vmatprep.subr.mxu0 0.0
        %233 = vmatpush1.xpose.msra.mxu0 0.0
        %234 = vmatprep.subr.mxu0 0.0
        %235 = vmatpush1.xpose.msra.mxu0 0.0
        %236 = vmatprep.subr.mxu0 0.0
        %237 = vmatpush1.xpose.msra.mxu0 0.0
        %238 = vmatprep.subr.mxu0 0.0
        %239 = vmatpush1.xpose.msra.mxu0 0.0
        %240 = vmatprep.subr.mxu0 0.0
        %241 = vmatpush1.xpose.msra.mxu0 0.0
        %242 = vmatprep.subr.mxu0 0.0
        %243 = vmatpush1.xpose.msra.mxu0 0.0
        %244 = vmatprep.subr.mxu0 0.0
        %245 = vmatpush1.xpose.msra.mxu0 0.0
        %246 = vmatprep.subr.mxu0 0.0
        %247 = vmatpush1.xpose.msra.mxu0 0.0
        %248 = vmatprep.subr.mxu0 0.0
        %249 = vmatpush1.xpose.msra.mxu0 0.0
        %250 = vmatprep.subr.mxu0 0.0
        %251 = vmatpush1.xpose.msra.mxu0 0.0
        %252 = vmatprep.subr.mxu0 0.0
        %253 = vmatpush1.xpose.msra.mxu0 0.0
        %254 = vmatprep.subr.mxu0 0.0
        %255 = vmatpush1.xpose.msra.mxu0 0.0
        %256 = vmatprep.subr.mxu0 0.0
        %257 = vmatpush1.xpose.msra.mxu0 0.0
        %258 = vmatprep.subr.mxu0 0.0
        %259 = vmatpush1.xpose.msra.mxu0 0.0
        %260 = vmatprep.subr.mxu0 0.0
        %261 = vmatpush1.xpose.msra.mxu0 0.0
        %262 = vmatprep.subr.mxu0 0.0
        %263 = vmatpush1.xpose.msra.mxu0 0.0
        %264 = vmatprep.subr.mxu0 0.0
        %265 = vmatpush1.xpose.msra.mxu0 0.0
        %266 = vmatprep.subr.mxu0 0.0
        %267 = vmatpush1.xpose.msra.mxu0 0.0
        %268 = vmatprep.subr.mxu0 0.0
        %269 = vmatpush1.xpose.msra.mxu0 0.0
        %270 = vmatprep.subr.mxu0 0.0
        %271 = vmatpush1.xpose.msra.mxu0 0.0
        %272 = vmatprep.subr.mxu0 0.0
        %273 = vmatpush1.xpose.msra.mxu0 0.0
        %274 = vmatprep.subr.mxu0 0.0
        %275 = vmatpush1.xpose.msra.mxu0 0.0
        %276 = vmatprep.mubr.f32.mxu0 0.0
        %277 = vmatmul.mubr.f32.gmra.mrb[0].mxu0 %v186
        %v278 = vpop.f32.mrb[0].mxu0
        %v279 = vadd.f32 0.0, %v278
        %v280 = vpop.f32.mrb[0].mxu0
        %281 = vdwg.mxu0
        %v282 = vtanh.pop %v279
        %vm283 = vcmask 523264
        %284 = vst.msk [vmem:[%s164] sm:$0xff] %vm283, %v282
        %s285 = sand.u32 %s90, 1
        %s286 = scalar_lea.sflag [#allocation3], %s285
        %s287 = sand.u32 %s90, 1
        %s288 = smul.addr %s287, 8
        %s289 = scalar_lea.vmem [#allocation2], %s288
        // Predicated region
        $region29: #{linear_block_forward.1} parent=27 // pred_check
          %p290 = pneg %p100
        $region30: #{linear_block_forward.1} parent=27 // pred_check_branch
          %292 = sbr.rel (%p290) target = $region32
        $region31: #{linear_block_forward.1} parent=27 // pred_region
          %s294 = ssub.s32 128, 128
          %295 = vsyncadd %s286, %s294
          %s296 = sadd.s32 %s21, %s20
          %s297 = smul.addr %s296, 128
          %s298 = scalar_lea.hbm %s2, %s297
          %s300 = sshll.u32 %s289, 4
          %s301 = int_to_ptr.vmem [resolvable:$true] %s300
          %303 = dma.vmem_to_hbm [thread:$0]  %s301, 128, %s298, %s286
        $region32: #{linear_block_forward.1} parent=27 // pred_fallthru
          _
      $region28: #{linear_block_forward.1} parent=5 // pred_fallthru
        _
      %p304 = scmp.le.s32.totalorder 2, %s11
      // Predicated region
      $region33: #{linear_block_forward.1} parent=5 // pred_check
        %p305 = pneg %p304
      $region34: #{linear_block_forward.1} parent=5 // pred_check_branch
        %307 = sbr.rel (%p305) target = $region36
      $region35: #{linear_block_forward.1} parent=5 // pred_region
        %s308 = ssub.s32 %s11, 2
        // Predicated region
        $region37: #{linear_block_forward.1} parent=35 // pred_check
          %p309 = pneg %p106
        $region38: #{linear_block_forward.1} parent=35 // pred_check_branch
          %311 = sbr.rel (%p309) target = $region40
        $region39: #{linear_block_forward.1} parent=35 // pred_region
          %s312 = sand.u32 %s91, 1
          %s313 = scalar_lea.sflag [#allocation3], %s312
          %s314 = sand.u32 %s91, 1
          %s315 = smul.addr %s314, 8
          %s316 = scalar_lea.vmem [#allocation2], %s315
          %317 = dma.done %s313, 128
        $region40: #{linear_block_forward.1} parent=35 // pred_fallthru
          _
      $region36: #{linear_block_forward.1} parent=5 // pred_fallthru
        _
    $region6: #{linear_block_forward.1} parent=1 // loop_footer
      %s15 = sadd.s32 1, %s11
    $region7: #{linear_block_forward.1} parent=1 // loop_footer_branch
      %10 = sbr.rel target = $region3
    $region8: #{linear_block_forward.1} parent=1 // loop_exit
      _
    %318 = vsyncpa [#allocation3], 1
    %s319 = scalar_lea.sflag [#allocation3], 1
    %320 = vsyncpa %s319, 1

</llo_original>
